<compile_context>
chip_gen: v6e
topology: v6e:2x2x1
jax: 0.10.0
libtpu: 0.0.40
codegen_flags: <defaults>
</compile_context>

<pallas_src>
import functools

import numpy as np
import jax
import jax.numpy as jnp
from jax.experimental import pallas as pl
from jax.experimental.pallas import tpu as pltpu


# ----------------------------------------------------------------------------
# Fused kernel body: fusion convs + ReLU + generation conv + Sigmoid.
# ----------------------------------------------------------------------------
def _bablock_kernel(*refs, num_pre, nb):
    # refs = [cur_x, pre_x_0..pre_x_{P-1}, w_fusion, w_gen, out]
    cur_ref = refs[0]
    pre_refs = refs[1:1 + num_pre]
    w_fus_ref = refs[1 + num_pre]      # (c_red, total_cin)  native dtype
    w_gen_ref = refs[2 + num_pre]      # (cur_c, c_red)      native dtype
    o_ref = refs[3 + num_pre]

    w_fus = w_fus_ref[...]
    w_gen = w_gen_ref[...]
    cd = w_fus.dtype                   # model compute dtype (f32 or bf16)

    # nb is a small static int -> fully unrolled; each b is an independent
    # batch element inside the current (nb, C, tile) block.
    for b in range(nb):
        parts = [cur_ref[b]] + [p[b] for p in pre_refs]
        # Single K = sum(Cin) contraction (cheap VMEM concat) instead of P+1
        # skinny dots -> better MXU utilization per grid step.
        x = parts[0] if num_pre == 0 else jnp.concatenate(parts, axis=0)
        fusion = jnp.dot(w_fus, x, preferred_element_type=jnp.float32)
        fusion = jnp.maximum(fusion, 0.0).astype(cd)          # ReLU
        att = jnp.dot(w_gen, fusion, preferred_element_type=jnp.float32)
        o_ref[b] = jax.nn.sigmoid(att).astype(o_ref.dtype)


# ----------------------------------------------------------------------------
# Shape/VMEM-aware tiling plan.
# ----------------------------------------------------------------------------
def _vmem_capacity_bytes():
    try:
        return int(pltpu.get_tpu_info().vmem_capacity_bytes)
    except Exception:
        return 64 * 1024 * 1024        # conservative (v7x-sized) fallback


def _plan_tiling(N, HW, total_cin, cur_c, c_red, elem_bytes):
    capacity = _vmem_capacity_bytes()
    # <=48 MiB class budget on v7x (64 MiB VMEM), ~90-100 MiB on v5e/v6e.
    budget = min(int(0.7 * capacity), 100 * 1024 * 1024)

    # VMEM bytes needed per spatial column (per lane), for nb = 1:
    lane_cost = 2 * (total_cin + cur_c) * elem_bytes   # double-buffered I/O tiles
    lane_cost += total_cin * elem_bytes                # in-kernel concat copy
    lane_cost += (c_red + cur_c) * 4                   # f32 fusion/att temporaries

    if HW < 128:
        tile = HW                                      # full-extent block (legal)
    else:
        vmem_lanes = max(128, (budget // lane_cost) // 128 * 128)
        tile = int(min(vmem_lanes, 8192, (HW // 128) * 128))
    num_sp = pl.cdiv(HW, tile)                         # ragged last tile is OK

    # Fold multiple batch elements per grid step for tiny-spatial workloads
    # (amortizes the ~0.35us/step overhead) while keeping >= 2 grid steps so
    # both v7x TensorCores stay busy, and staying inside the VMEM budget.
    nb = 1
    hbm_per_lane = (total_cin + cur_c) * elem_bytes
    while True:
        nb2 = nb * 2
        if nb2 > N or N % nb2 != 0:
            break
        if (N // nb2) * num_sp < 2:
            break
        if nb2 * lane_cost * tile > budget:
            break
        if nb * hbm_per_lane * tile >= 2 * 1024 * 1024:
            break                                      # per-step traffic ample
        nb = nb2

    return tile, num_sp, nb, budget


# ----------------------------------------------------------------------------
# Wrapper: one pallas_call for the whole block.
# ----------------------------------------------------------------------------
def bablock_forward_pallas(pre_layers, cur_layer, params):
    """pre_layers: list of (N, pre_c_i, H, W); cur_layer: (N, cur_c, H, W)."""
    w_cur = params["w_cur"]            # (c_red, cur_c)
    w_pres = params["w_pre"]           # list of (c_red, pre_c_i)
    w_gen = params["w_gen"]            # (cur_c, c_red)

    N, cur_c, H, W = cur_layer.shape
    HW = H * W
    num_pre = len(pre_layers)
    c_red = w_gen.shape[1]
    dtype = cur_layer.dtype
    elem_bytes = jnp.dtype(dtype).itemsize

    # NCHW -> (N, C, H*W): contiguous reshape only, no transpose.
    cur3 = cur_layer.reshape(N, cur_c, HW)
    pre3 = [p.astype(dtype).reshape(N, p.shape[1], HW) for p in pre_layers]

    # Fuse [w_cur | w_pre_0 | ...] along Cin once; cast weights to the
    # activation dtype once here (never per grid step).
    w_fusion = jnp.concatenate([w_cur] + list(w_pres), axis=1).astype(dtype)
    w_gen_c = w_gen.astype(dtype)
    total_cin = w_fusion.shape[1]

    tile, num_sp, nb, vmem_budget = _plan_tiling(
        N, HW, total_cin, cur_c, c_red, elem_bytes)
    grid = (N // nb, num_sp)

    in_specs = [pl.BlockSpec((nb, cur_c, tile), lambda n, s: (n, 0, s))]
    for p in pre3:
        in_specs.append(
            pl.BlockSpec((nb, p.shape[1], tile), lambda n, s: (n, 0, s)))
    in_specs.append(pl.BlockSpec(w_fusion.shape, lambda n, s: (0, 0)))
    in_specs.append(pl.BlockSpec(w_gen_c.shape, lambda n, s: (0, 0)))

    flops = 2 * N * HW * (total_cin * c_red + c_red * cur_c)
    bytes_accessed = (N * HW * (total_cin + cur_c) * elem_bytes
                      + (w_fusion.size + w_gen_c.size) * elem_bytes)
    cost = pl.CostEstimate(flops=int(flops),
                           transcendentals=int(N * HW * cur_c),
                           bytes_accessed=int(bytes_accessed))

    kernel = functools.partial(_bablock_kernel, num_pre=num_pre, nb=nb)
    out3 = pl.pallas_call(
        kernel,
        out_shape=jax.ShapeDtypeStruct((N, cur_c, HW), dtype),
        grid=grid,
        in_specs=in_specs,
        out_specs=pl.BlockSpec((nb, cur_c, tile), lambda n, s: (n, 0, s)),
        compiler_params=pltpu.CompilerParams(
            dimension_semantics=("parallel", "parallel"),
            vmem_limit_bytes=int(vmem_budget)),
        cost_estimate=cost,
    )(cur3, *pre3, w_fusion, w_gen_c)

    return out3.reshape(N, cur_c, H, W)


# ----------------------------------------------------------------------------
# Deterministic parameter init (1x1 conv weights, bias=False as in PyTorch).
# ----------------------------------------------------------------------------
def init_bablock(key, pre_channels, cur_channel, reduction=16):
    c_red = cur_channel // reduction
    assert c_red >= 1, "cur_channel must be >= reduction"
    keys = jax.random.split(key, len(pre_channels) + 2)
    w_pre = [
        jax.random.normal(keys[i], (c_red, pc), jnp.float32) / np.sqrt(pc)
        for i, pc in enumerate(pre_channels)
    ]
    w_cur = jax.random.normal(keys[-2], (c_red, cur_channel),
                              jnp.float32) / np.sqrt(cur_channel)
    w_gen = jax.random.normal(keys[-1], (cur_channel, c_red),
                              jnp.float32) / np.sqrt(c_red)
    return {"w_pre": w_pre, "w_cur": w_cur, "w_gen": w_gen}


# ----------------------------------------------------------------------------
# Pure-JAX reference (mirrors the PyTorch forward exactly).
# ----------------------------------------------------------------------------
def bablock_forward_ref(pre_layers, cur_layer, params):
    def conv1x1(x, w):                       # x: NCHW, w: (Cout, Cin)
        return jnp.einsum("oc,nchw->nohw", w, x)

    pre_fusions = [conv1x1(p, w) for p, w in zip(pre_layers, params["w_pre"])]
    cur_fusion = conv1x1(cur_layer, params["w_cur"])
    fusion = cur_fusion + sum(pre_fusions)
    att = conv1x1(jnp.maximum(fusion, 0.0), params["w_gen"])
    return jax.nn.sigmoid(att)


if __name__ == "__main__":
    key = jax.random.PRNGKey(0)
    N, H, W = 2, 16, 16
    cur_channel, reduction = 64, 16          # cur_channel // reduction = 4
    pre_channels = [32, 48]

    kcur, kparam, *kpre = jax.random.split(key, 2 + len(pre_channels))
    cur = jax.random.normal(kcur, (N, cur_channel, H, W), jnp.float32)
    pres = [jax.random.normal(kpre[i], (N, pc, H, W), jnp.float32)
            for i, pc in enumerate(pre_channels)]

    params = init_bablock(kparam, pre_channels, cur_channel, reduction)

    # f32 path
    out = jax.block_until_ready(bablock_forward_pallas(pres, cur, params))
    ref = bablock_forward_ref(pres, cur, params)
    assert out.shape == (N, cur_channel, H, W) and out.dtype == cur.dtype
    np.testing.assert_allclose(np.asarray(out), np.asarray(ref),
                               rtol=1e-4, atol=1e-5)

    # bf16 I/O path (halves HBM traffic; MXU bf16 operands, f32 accumulation)
    out_bf16 = jax.block_until_ready(
        bablock_forward_pallas([p.astype(jnp.bfloat16) for p in pres],
                               cur.astype(jnp.bfloat16), params))
    assert out_bf16.dtype == jnp.bfloat16
    np.testing.assert_allclose(np.asarray(out_bf16, dtype=np.float32),
                               np.asarray(ref), rtol=2e-2, atol=2e-2)

    # Ragged spatial extent (H*W not a multiple of 128) -> cdiv grid with a
    # masked last tile plus batch-blocking (nb=2); no full-HW fallback.
    Hs, Ws = 15, 15
    cur_s = jax.random.normal(kcur, (N, cur_channel, Hs, Ws), jnp.float32)
    pres_s = [jax.random.normal(kpre[i], (N, pc, Hs, Ws), jnp.float32)
              for i, pc in enumerate(pre_channels)]
    out_s = jax.block_until_ready(bablock_forward_pallas(pres_s, cur_s, params))
    ref_s = bablock_forward_ref(pres_s, cur_s, params)
    np.testing.assert_allclose(np.asarray(out_s), np.asarray(ref_s),
                               rtol=1e-4, atol=1e-5)

    print("KERNEL_OK")
</pallas_src>

<mosaic_0001>
module attributes {stable_mosaic.version = 11 : i64} {
  func.func @_bablock_kernel(%arg0: i32, %arg1: i32, %arg2: memref<1x64x256xf32, #tpu.memory_space<vmem>>, %arg3: memref<1x32x256xf32, #tpu.memory_space<vmem>>, %arg4: memref<1x48x256xf32, #tpu.memory_space<vmem>>, %arg5: memref<4x144xf32, #tpu.memory_space<vmem>>, %arg6: memref<64x4xf32, #tpu.memory_space<vmem>>, %arg7: memref<1x64x256xf32, #tpu.memory_space<vmem>>) attributes {dimension_semantics = [#tpu.dimension_semantics<parallel>, #tpu.dimension_semantics<parallel>], iteration_bounds = array<i64: 2, 1>, scalar_prefetch = 0 : i64, scratch_operands = 0 : i64, tpu.core_type = #tpu.core_type<tc>, window_params = [{transform_indices = @transform_0, window_bounds = array<i64: 1, 64, 256>}, {transform_indices = @transform_1, window_bounds = array<i64: 1, 32, 256>}, {transform_indices = @transform_2, window_bounds = array<i64: 1, 48, 256>}, {pipeline_mode = #tpu.pipeline_mode<synchronous>, transform_indices = @transform_3, window_bounds = array<i64: 4, 144>}, {pipeline_mode = #tpu.pipeline_mode<synchronous>, transform_indices = @transform_4, window_bounds = array<i64: 64, 4>}, {transform_indices = @transform_5, window_bounds = array<i64: 1, 64, 256>}]} {
    %c0 = arith.constant 0 : index
    %c0_0 = arith.constant 0 : index
    %0 = vector.load %arg5[%c0, %c0_0] : memref<4x144xf32, #tpu.memory_space<vmem>>, vector<4x144xf32>
    %c0_1 = arith.constant 0 : index
    %c0_2 = arith.constant 0 : index
    %1 = vector.load %arg6[%c0_1, %c0_2] : memref<64x4xf32, #tpu.memory_space<vmem>>, vector<64x4xf32>
    %c0_3 = arith.constant 0 : index
    %c0_4 = arith.constant 0 : index
    %c0_5 = arith.constant 0 : index
    %2 = vector.load %arg2[%c0_3, %c0_4, %c0_5] : memref<1x64x256xf32, #tpu.memory_space<vmem>>, vector<1x64x256xf32>
    %3 = vector.shape_cast %2 : vector<1x64x256xf32> to vector<64x256xf32>
    %c0_6 = arith.constant 0 : index
    %c0_7 = arith.constant 0 : index
    %c0_8 = arith.constant 0 : index
    %4 = vector.load %arg3[%c0_6, %c0_7, %c0_8] : memref<1x32x256xf32, #tpu.memory_space<vmem>>, vector<1x32x256xf32>
    %5 = vector.shape_cast %4 : vector<1x32x256xf32> to vector<32x256xf32>
    %c0_9 = arith.constant 0 : index
    %c0_10 = arith.constant 0 : index
    %c0_11 = arith.constant 0 : index
    %6 = vector.load %arg4[%c0_9, %c0_10, %c0_11] : memref<1x48x256xf32, #tpu.memory_space<vmem>>, vector<1x48x256xf32>
    %7 = vector.shape_cast %6 : vector<1x48x256xf32> to vector<48x256xf32>
    %8 = tpu.concatenate %3, %5, %7 in 0 : vector<64x256xf32>, vector<32x256xf32>, vector<48x256xf32> -> vector<144x256xf32>
    %cst = arith.constant dense<0.000000e+00> : vector<4x256xf32>
    %9 = tpu.matmul %0, %8, %cst {dimension_numbers = #tpu.dot_dimension_numbers<[1], [0], [0], [1], [0, 0, 1, 1], [], []>} : vector<4x144xf32>, vector<144x256xf32>, vector<4x256xf32> -> vector<4x256xf32>
    %cst_12 = arith.constant 0.000000e+00 : f32
    %10 = vector.broadcast %cst_12 : f32 to vector<4x256xf32>
    %11 = arith.maximumf %9, %10 : vector<4x256xf32>
    %cst_13 = arith.constant dense<0.000000e+00> : vector<64x256xf32>
    %12 = tpu.matmul %1, %11, %cst_13 {dimension_numbers = #tpu.dot_dimension_numbers<[1], [0], [0], [1], [0, 0, 1, 1], [], []>} : vector<64x4xf32>, vector<4x256xf32>, vector<64x256xf32> -> vector<64x256xf32>
    %13 = arith.negf %12 : vector<64x256xf32>
    %14 = math.exp %13 : vector<64x256xf32>
    %cst_14 = arith.constant 1.000000e+00 : f32
    %15 = vector.broadcast %cst_14 : f32 to vector<64x256xf32>
    %16 = arith.addf %15, %14 : vector<64x256xf32>
    %17 = arith.divf %15, %16 : vector<64x256xf32>
    %c0_15 = arith.constant 0 : index
    %c0_16 = arith.constant 0 : index
    %c0_17 = arith.constant 0 : index
    %18 = vector.load %arg7[%c0_15, %c0_16, %c0_17] : memref<1x64x256xf32, #tpu.memory_space<vmem>>, vector<1x64x256xf32>
    %19 = vector.shape_cast %18 : vector<1x64x256xf32> to vector<64x256xf32>
    %20 = vector.shape_cast %17 : vector<64x256xf32> to vector<1x64x256xf32>
    tpu.vector_store %arg7[%c0_15, %c0_16, %c0_17], %20 {strides = array<i32>} : memref<1x64x256xf32, #tpu.memory_space<vmem>>, vector<1x64x256xf32>,
    return
  }
  func.func @transform_0(%arg0: i32, %arg1: i32) -> (i32, i32, i32) {
    %c0_i32 = arith.constant 0 : i32
    %c0_i32_0 = arith.constant 0 : i32
    return %arg0, %c0_i32, %arg1 : i32, i32, i32
  }
  func.func @transform_1(%arg0: i32, %arg1: i32) -> (i32, i32, i32) {
    %c0_i32 = arith.constant 0 : i32
    %c0_i32_0 = arith.constant 0 : i32
    return %arg0, %c0_i32, %arg1 : i32, i32, i32
  }
  func.func @transform_2(%arg0: i32, %arg1: i32) -> (i32, i32, i32) {
    %c0_i32 = arith.constant 0 : i32
    %c0_i32_0 = arith.constant 0 : i32
    return %arg0, %c0_i32, %arg1 : i32, i32, i32
  }
  func.func @transform_3(%arg0: i32, %arg1: i32) -> (i32, i32) {
    %c0_i32 = arith.constant 0 : i32
    %c0_i32_0 = arith.constant 0 : i32
    %c0_i32_1 = arith.constant 0 : i32
    return %c0_i32, %c0_i32_0 : i32, i32
  }
  func.func @transform_4(%arg0: i32, %arg1: i32) -> (i32, i32) {
    %c0_i32 = arith.constant 0 : i32
    %c0_i32_0 = arith.constant 0 : i32
    %c0_i32_1 = arith.constant 0 : i32
    return %c0_i32, %c0_i32_0 : i32, i32
  }
  func.func @transform_5(%arg0: i32, %arg1: i32) -> (i32, i32, i32) {
    %c0_i32 = arith.constant 0 : i32
    %c0_i32_0 = arith.constant 0 : i32
    return %arg0, %c0_i32, %arg1 : i32, i32, i32
  }
}

</mosaic_0001>

<llo_original>
// kernel: tpu_custom_call.1
$region0: #{tpu_custom_call.1}
  #allocation0 [shape = 'u32[]', space=smem, size = 0x4, offset = 0x4, fixed_abs, tag = 'smem constant byte address 0x4 - core index']
  #allocation1 [shape = 'u32[144,128]{1,0:T(1,128)}', space=vmem, size = 0x12000, scoped, tag = 'internal scratch']
  %s0 = inlined_call_operand.hbm [shape: f32[2,64,256], index: 0, kind: input, shape index: {}]
  %s1 = inlined_call_operand.hbm [shape: f32[2,32,256], index: 1, kind: input, shape index: {}]
  %s2 = inlined_call_operand.hbm [shape: f32[2,48,256], index: 2, kind: input, shape index: {}]
  %s3 = inlined_call_operand.vmem [shape: f32[4,144], index: 3, kind: input, shape index: {}]
  %s4 = inlined_call_operand.vmem [shape: f32[64,4], index: 4, kind: input, shape index: {}]
  %s5 = inlined_call_operand.hbm [shape: f32[2,64,256], index: 5, kind: output, shape index: {}]
  %s6 = sld [smem:[#allocation0]]
  $region65: #{tpu_custom_call.1} parent=0
    _
  %s8 = ssub.s32 1, %s6
  %s9 = scalar_select 0, %s8, %s6
  $region1: #{tpu_custom_call.1} parent=0
    #allocation2 [shape = 'u8[131072]{0}', space=vmem, size = 0x20000, scoped, tag = 'input window, operand 0']
    #allocation3 [shape = 's32[2]{0}', space=sflag, size = 0x8, scoped, tag = 'scoped memory for tpu_custom_call.1']
    #allocation4 [shape = 's32[2]{0}', space=sflag, size = 0x8, scoped, tag = 'scoped memory for tpu_custom_call.1']
    #allocation5 [shape = 'u8[65536]{0}', space=vmem, size = 0x10000, scoped, tag = 'input window, operand 1']
    #allocation6 [shape = 's32[2]{0}', space=sflag, size = 0x8, scoped, tag = 'scoped memory for tpu_custom_call.1']
    #allocation7 [shape = 'u8[98304]{0}', space=vmem, size = 0x18000, scoped, tag = 'input window, operand 2']
    #allocation8 [shape = 'u8[131072]{0}', space=vmem, size = 0x20000, scoped, tag = 'output window, operand 0']
    %10 = vsyncpa [#allocation3], 0
    %s11 = scalar_lea.sflag [#allocation3], 1
    %12 = vsyncpa %s11, 0
    %13 = vsyncpa [#allocation6], 0
    %s14 = scalar_lea.sflag [#allocation6], 1
    %15 = vsyncpa %s14, 0
    %16 = vsyncpa [#allocation4], 0
    %s17 = scalar_lea.sflag [#allocation4], 1
    %18 = vsyncpa %s17, 0
    loop: start=0, step=1, limit=4
    $region2: #{tpu_custom_call.1} parent=1 // loop_pre_header
      _
    $region3: #{tpu_custom_call.1} parent=1 // loop_header
      %s20 = sphi 0, %s24
      %p21 = scmp.ge.s32.totalorder %s20, 4
      %s27 = sphi 0, %s39
      %s28 = sphi 0, %s35
      %s29 = sphi 0, %s27
      %s30 = sphi 0, %s28
      %s31 = sphi 0, %s29
      %s32 = sphi 0, %s30
      %s44 = sphi 0, %s46
      %s47 = sphi 0, %s44
      %s48 = sphi 0, %s47
      %s64 = sphi 0, %s48
      %s72 = sphi 0, %s74
      %s75 = sphi 0, %s72
      %s76 = sphi 0, %s75
      %s92 = sphi 0, %s76
      %s100 = sphi 0, %s102
      %s103 = sphi 0, %s100
      %s104 = sphi 0, %s103
      %s120 = sphi 0, %s104
      %s124 = sphi 0, %s124
      %s126 = sphi 0, %s124
      %s127 = sphi 0, %s126
      %s141 = sphi 0, %s127
      %s145 = sphi 0, %s145
      %s147 = sphi 0, %s145
      %s148 = sphi 0, %s147
      %s162 = sphi 0, %s148
      %s170 = sphi 0, %s172
      %s173 = sphi 0, %s170
      %s174 = sphi 0, %s173
      %s190 = sphi 0, %s174
    $region4: #{tpu_custom_call.1} parent=1 // loop_header_branch
      %23 = sbr.rel (%p21) target = $region8
    $region5: #{tpu_custom_call.1} parent=1 // loop_body
      %s25 = ssub.s32 %s20, 1
      %s26 = ssub.s32 %s20, 2
      %s33 = sadd.s32 1, %s28
      %p34 = scmp.ge.s32.totalorder %s33, 1
      %s35 = scalar_select %p34, 0, %s33
      %s36 = sadd.s32 1, %s27
      %s37 = scalar_select %p34, %s36, %s27
      %p38 = scmp.ge.s32.totalorder %s37, 2
      %s39 = scalar_select %p38, 0, %s37
      %s40 = ssub.s32 %s27, %s39
      %s41 = ssub.s32 %s28, %s35
      %s42 = sor.u32 %s40, %s41
      %p43 = scmp.eq.s32.totalorder %s42, 0
      %s45 = sadd.s32 %s44, 1
      %s46 = scalar_select %p43, %s44, %s45
      %p49 = pneg %p43
      %p50 = scmp.eq.s32.totalorder %s20, 1
      %p51 = por %p49, %p50
      %p52 = scmp.ne.s32.totalorder %s44, %s47
      %p53 = scmp.eq.s32.totalorder %s20, 0
      %p54 = por %p52, %p53
      %p55 = scmp.ne.s32.totalorder %s44, %s47
      %p56 = scmp.eq.s32.totalorder %s25, 1
      %p57 = por %p55, %p56
      %p58 = scmp.ne.s32.totalorder %s47, %s48
      %p59 = scmp.eq.s32.totalorder %s25, 0
      %p60 = por %p58, %p59
      %p61 = scmp.ne.s32.totalorder %s47, %s48
      %p62 = scmp.eq.s32.totalorder %s26, 1
      %p63 = por %p61, %p62
      %p65 = scmp.ne.s32.totalorder %s48, %s64
      %p66 = scmp.eq.s32.totalorder %s26, 0
      %p67 = por %p65, %p66
      %s68 = ssub.s32 %s27, %s39
      %s69 = ssub.s32 %s28, %s35
      %s70 = sor.u32 %s68, %s69
      %p71 = scmp.eq.s32.totalorder %s70, 0
      %s73 = sadd.s32 %s72, 1
      %s74 = scalar_select %p71, %s72, %s73
      %p77 = pneg %p71
      %p78 = scmp.eq.s32.totalorder %s20, 1
      %p79 = por %p77, %p78
      %p80 = scmp.ne.s32.totalorder %s72, %s75
      %p81 = scmp.eq.s32.totalorder %s20, 0
      %p82 = por %p80, %p81
      %p83 = scmp.ne.s32.totalorder %s72, %s75
      %p84 = scmp.eq.s32.totalorder %s25, 1
      %p85 = por %p83, %p84
      %p86 = scmp.ne.s32.totalorder %s75, %s76
      %p87 = scmp.eq.s32.totalorder %s25, 0
      %p88 = por %p86, %p87
      %p89 = scmp.ne.s32.totalorder %s75, %s76
      %p90 = scmp.eq.s32.totalorder %s26, 1
      %p91 = por %p89, %p90
      %p93 = scmp.ne.s32.totalorder %s76, %s92
      %p94 = scmp.eq.s32.totalorder %s26, 0
      %p95 = por %p93, %p94
      %s96 = ssub.s32 %s27, %s39
      %s97 = ssub.s32 %s28, %s35
      %s98 = sor.u32 %s96, %s97
      %p99 = scmp.eq.s32.totalorder %s98, 0
      %s101 = sadd.s32 %s100, 1
      %s102 = scalar_select %p99, %s100, %s101
      %p105 = pneg %p99
      %p106 = scmp.eq.s32.totalorder %s20, 1
      %p107 = por %p105, %p106
      %p108 = scmp.ne.s32.totalorder %s100, %s103
      %p109 = scmp.eq.s32.totalorder %s20, 0
      %p110 = por %p108, %p109
      %p111 = scmp.ne.s32.totalorder %s100, %s103
      %p112 = scmp.eq.s32.totalorder %s25, 1
      %p113 = por %p111, %p112
      %p114 = scmp.ne.s32.totalorder %s103, %s104
      %p115 = scmp.eq.s32.totalorder %s25, 0
      %p116 = por %p114, %p115
      %p117 = scmp.ne.s32.totalorder %s103, %s104
      %p118 = scmp.eq.s32.totalorder %s26, 1
      %p119 = por %p117, %p118
      %p121 = scmp.ne.s32.totalorder %s104, %s120
      %p122 = scmp.eq.s32.totalorder %s26, 0
      %p123 = por %p121, %p122
      %s125 = sadd.s32 %s124, 1
      %p128 = scmp.eq.s32.totalorder %s20, 1
      %p129 = scmp.ne.s32.totalorder %s124, %s126
      %p130 = scmp.eq.s32.totalorder %s20, 0
      %p131 = por %p129, %p130
      %p132 = scmp.ne.s32.totalorder %s124, %s126
      %p133 = scmp.eq.s32.totalorder %s25, 1
      %p134 = por %p132, %p133
      %p135 = scmp.ne.s32.totalorder %s126, %s127
      %p136 = scmp.eq.s32.totalorder %s25, 0
      %p137 = por %p135, %p136
      %p138 = scmp.ne.s32.totalorder %s126, %s127
      %p139 = scmp.eq.s32.totalorder %s26, 1
      %p140 = por %p138, %p139
      %p142 = scmp.ne.s32.totalorder %s127, %s141
      %p143 = scmp.eq.s32.totalorder %s26, 0
      %p144 = por %p142, %p143
      %s146 = sadd.s32 %s145, 1
      %p149 = scmp.eq.s32.totalorder %s20, 1
      %p150 = scmp.ne.s32.totalorder %s145, %s147
      %p151 = scmp.eq.s32.totalorder %s20, 0
      %p152 = por %p150, %p151
      %p153 = scmp.ne.s32.totalorder %s145, %s147
      %p154 = scmp.eq.s32.totalorder %s25, 1
      %p155 = por %p153, %p154
      %p156 = scmp.ne.s32.totalorder %s147, %s148
      %p157 = scmp.eq.s32.totalorder %s25, 0
      %p158 = por %p156, %p157
      %p159 = scmp.ne.s32.totalorder %s147, %s148
      %p160 = scmp.eq.s32.totalorder %s26, 1
      %p161 = por %p159, %p160
      %p163 = scmp.ne.s32.totalorder %s148, %s162
      %p164 = scmp.eq.s32.totalorder %s26, 0
      %p165 = por %p163, %p164
      %s166 = ssub.s32 %s27, %s39
      %s167 = ssub.s32 %s28, %s35
      %s168 = sor.u32 %s166, %s167
      %p169 = scmp.eq.s32.totalorder %s168, 0
      %s171 = sadd.s32 %s170, 1
      %s172 = scalar_select %p169, %s170, %s171
      %p175 = pneg %p169
      %p176 = scmp.eq.s32.totalorder %s20, 1
      %p177 = por %p175, %p176
      %p178 = scmp.ne.s32.totalorder %s170, %s173
      %p179 = scmp.eq.s32.totalorder %s20, 0
      %p180 = por %p178, %p179
      %p181 = scmp.ne.s32.totalorder %s170, %s173
      %p182 = scmp.eq.s32.totalorder %s25, 1
      %p183 = por %p181, %p182
      %p184 = scmp.ne.s32.totalorder %s173, %s174
      %p185 = scmp.eq.s32.totalorder %s25, 0
      %p186 = por %p184, %p185
      %p187 = scmp.ne.s32.totalorder %s173, %s174
      %p188 = scmp.eq.s32.totalorder %s26, 1
      %p189 = por %p187, %p188
      %p191 = scmp.ne.s32.totalorder %s174, %s190
      %p192 = scmp.eq.s32.totalorder %s26, 0
      %p193 = por %p191, %p192
      %p194 = scmp.le.s32.totalorder 1, %s20
      %p195 = scmp.lt.s32.totalorder %s20, 3
      %p196 = pnand %p194, %p195
      %p197 = pneg %p196
      // Predicated region
      $region9: #{tpu_custom_call.1} parent=5 // pred_check
        _
      $region10: #{tpu_custom_call.1} parent=5 // pred_check_branch
        %199 = sbr.rel (%p196) target = $region12
      $region11: #{tpu_custom_call.1} parent=5 // pred_region
        %s200 = ssub.s32 %s20, 1
        // Predicated region
        $region13: #{tpu_custom_call.1} parent=11 // pred_check
          %p201 = pneg %p137
        $region14: #{tpu_custom_call.1} parent=11 // pred_check_branch
          %203 = sbr.rel (%p201) target = $region16
        $region15: #{tpu_custom_call.1} parent=11 // pred_region
          _
        $region16: #{tpu_custom_call.1} parent=11 // pred_fallthru
          _
        // Predicated region
        $region17: #{tpu_custom_call.1} parent=11 // pred_check
          %p204 = pneg %p158
        $region18: #{tpu_custom_call.1} parent=11 // pred_check_branch
          %206 = sbr.rel (%p204) target = $region20
        $region19: #{tpu_custom_call.1} parent=11 // pred_region
          _
        $region20: #{tpu_custom_call.1} parent=11 // pred_fallthru
          _
      $region12: #{tpu_custom_call.1} parent=5 // pred_fallthru
        _
      %p207 = scmp.lt.s32.totalorder %s20, 2
      // Predicated region
      $region21: #{tpu_custom_call.1} parent=5 // pred_check
        %p208 = pneg %p207
      $region22: #{tpu_custom_call.1} parent=5 // pred_check_branch
        %210 = sbr.rel (%p208) target = $region24
      $region23: #{tpu_custom_call.1} parent=5 // pred_region
        // Predicated region
        $region25: #{tpu_custom_call.1} parent=23 // pred_check
          %p211 = pneg %p54
        $region26: #{tpu_custom_call.1} parent=23 // pred_check_branch
          %213 = sbr.rel (%p211) target = $region28
        $region27: #{tpu_custom_call.1} parent=23 // pred_region
          %s214 = sand.u32 %s44, 1
          %s215 = scalar_lea.sflag [#allocation3], %s214
          %s216 = sand.u32 %s44, 1
          %s217 = smul.addr %s216, 128
          %s218 = scalar_lea.vmem [#allocation2], %s217
          %s219 = smul.u32 2, %s28
          %s221 = ssub.s32 2048, 2048
          %222 = vsyncadd %s215, %s221
          %s223 = smul.addr %s27, 16
          %s224 = sadd.s32 %s219, %s223
          %s225 = smul.addr %s224, 128
          %s226 = scalar_lea.hbm %s0, %s225
          %s227 = sshll.u32 %s218, 4
          %s228 = int_to_ptr.vmem [resolvable:$true] %s227
          %233 = dma.hbm_to_vmem [thread:$0]  %s226, 2048, %s228, %s215, 256, 256, 16
        $region28: #{tpu_custom_call.1} parent=23 // pred_fallthru
          _
        // Predicated region
        $region29: #{tpu_custom_call.1} parent=23 // pred_check
          %p234 = pneg %p82
        $region30: #{tpu_custom_call.1} parent=23 // pred_check_branch
          %236 = sbr.rel (%p234) target = $region32
        $region31: #{tpu_custom_call.1} parent=23 // pred_region
          %s237 = sand.u32 %s20, 1
          %s238 = scalar_lea.sflag [#allocation6], %s237
          %s239 = sand.u32 %s72, 1
          %s240 = smul.addr %s239, 64
          %s241 = scalar_lea.vmem [#allocation5], %s240
          %s242 = smul.u32 2, %s28
          %s244 = ssub.s32 1024, 1024
          %245 = vsyncadd %s238, %s244
          %s246 = smul.addr %s27, 8
          %s247 = sadd.s32 %s242, %s246
          %s248 = smul.addr %s247, 128
          %s249 = scalar_lea.hbm %s1, %s248
          %s250 = sshll.u32 %s241, 4
          %s251 = int_to_ptr.vmem [resolvable:$true] %s250
          %256 = dma.hbm_to_vmem [thread:$0]  %s249, 1024, %s251, %s238, 256, 256, 16
        $region32: #{tpu_custom_call.1} parent=23 // pred_fallthru
          _
        // Predicated region
        $region33: #{tpu_custom_call.1} parent=23 // pred_check
          %p257 = pneg %p110
        $region34: #{tpu_custom_call.1} parent=23 // pred_check_branch
          %259 = sbr.rel (%p257) target = $region36
        $region35: #{tpu_custom_call.1} parent=23 // pred_region
          %s260 = sand.u32 %s20, 1
          %s261 = scalar_lea.sflag [#allocation6], %s260
          %s262 = sand.u32 %s100, 1
          %s263 = smul.addr %s262, 96
          %s264 = scalar_lea.vmem [#allocation7], %s263
          %s265 = smul.u32 2, %s28
          %s267 = ssub.s32 1536, 1536
          %268 = vsyncadd %s261, %s267
          %s269 = smul.addr %s27, 12
          %s270 = sadd.s32 %s265, %s269
          %s271 = smul.addr %s270, 128
          %s272 = scalar_lea.hbm %s2, %s271
          %s273 = sshll.u32 %s264, 4
          %s274 = int_to_ptr.vmem [resolvable:$true] %s273
          %279 = dma.hbm_to_vmem [thread:$0]  %s272, 1536, %s274, %s261, 256, 256, 16
        $region36: #{tpu_custom_call.1} parent=23 // pred_fallthru
          _
      $region24: #{tpu_custom_call.1} parent=5 // pred_fallthru
        _
      %p280 = scmp.le.s32.totalorder 1, %s20
      %p281 = scmp.lt.s32.totalorder %s20, 3
      %p282 = pnand %p280, %p281
      %p283 = pneg %p282
      // Predicated region
      $region37: #{tpu_custom_call.1} parent=5 // pred_check
        _
      $region38: #{tpu_custom_call.1} parent=5 // pred_check_branch
        %285 = sbr.rel (%p282) target = $region40
      $region39: #{tpu_custom_call.1} parent=5 // pred_region
        %s286 = ssub.s32 %s20, 1
        %s287 = sand.u32 %s47, 1
        %s288 = scalar_lea.sflag [#allocation3], %s287
        %s289 = sand.u32 %s47, 1
        %s290 = smul.addr %s289, 128
        %s291 = scalar_lea.vmem [#allocation2], %s290
        // Predicated region
        $region41: #{tpu_custom_call.1} parent=39 // pred_check
          %p292 = pneg %p60
        $region42: #{tpu_custom_call.1} parent=39 // pred_check_branch
          %294 = sbr.rel (%p292) target = $region44
        $region43: #{tpu_custom_call.1} parent=39 // pred_region
          %295 = dma.done %s288, 2048
        $region44: #{tpu_custom_call.1} parent=39 // pred_fallthru
          _
        %s296 = sand.u32 %s25, 1
        %s297 = scalar_lea.sflag [#allocation6], %s296
        %s298 = sand.u32 %s75, 1
        %s299 = smul.addr %s298, 64
        %s300 = scalar_lea.vmem [#allocation5], %s299
        // Predicated region
        $region45: #{tpu_custom_call.1} parent=39 // pred_check
          %p301 = pneg %p88
        $region46: #{tpu_custom_call.1} parent=39 // pred_check_branch
          %303 = sbr.rel (%p301) target = $region48
        $region47: #{tpu_custom_call.1} parent=39 // pred_region
          %304 = dma.done %s297, 1024
        $region48: #{tpu_custom_call.1} parent=39 // pred_fallthru
          _
        %s305 = sand.u32 %s25, 1
        %s306 = scalar_lea.sflag [#allocation6], %s305
        %s307 = sand.u32 %s103, 1
        %s308 = smul.addr %s307, 96
        %s309 = scalar_lea.vmem [#allocation7], %s308
        // Predicated region
        $region49: #{tpu_custom_call.1} parent=39 // pred_check
          %p310 = pneg %p116
        $region50: #{tpu_custom_call.1} parent=39 // pred_check_branch
          %312 = sbr.rel (%p310) target = $region52
        $region51: #{tpu_custom_call.1} parent=39 // pred_region
          %313 = dma.done %s306, 1536
        $region52: #{tpu_custom_call.1} parent=39 // pred_fallthru
          _
        %s314 = sand.u32 %s47, 1
        %s315 = scalar_lea.sflag [#allocation3], %s314
        %s316 = sand.u32 %s47, 1
        %s317 = smul.addr %s316, 128
        %s318 = scalar_lea.vmem [#allocation2], %s317
        %p319 = pneg %p60
        %p320 = pneg %p57
        %s321 = sand.u32 %s25, 1
        %s322 = scalar_lea.sflag [#allocation6], %s321
        %s323 = sand.u32 %s75, 1
        %s324 = smul.addr %s323, 64
        %s325 = scalar_lea.vmem [#allocation5], %s324
        %p326 = pneg %p88
        %p327 = pneg %p85
        %s328 = sand.u32 %s25, 1
        %s329 = scalar_lea.sflag [#allocation6], %s328
        %s330 = sand.u32 %s103, 1
        %s331 = smul.addr %s330, 96
        %s332 = scalar_lea.vmem [#allocation7], %s331
        %p333 = pneg %p116
        %p334 = pneg %p113
        %p335 = pneg %p137
        %p336 = pneg %p134
        %p337 = pneg %p158
        %p338 = pneg %p155
        %p339 = pneg %p186
        %p340 = pneg %p183
        %s341 = sand.u32 %s173, 1
        %s342 = scalar_lea.sflag [#allocation4], %s341
        %s343 = sand.u32 %s173, 1
        %s344 = smul.addr %s343, 128
        %s345 = scalar_lea.vmem [#allocation8], %s344
        %s346 = smul.u32 2, %s30
        %s347 = smul.u32 2, %s30
        %s348 = smul.u32 2, %s30
        %s349 = smul.u32 2, %s30
        %v350 = vld [vmem:[%s3] sm:$0xff]
        %v351 = vld [vmem:[%s4] sm:$0xff]
        %v352 = vld [vmem:[%s4 + $0x8] sm:$0xff]
        %v353 = vld [vmem:[%s4 + $0x10] sm:$0xff]
        %v354 = vld [vmem:[%s4 + $0x18] sm:$0xff]
        %v355 = vld [vmem:[%s4 + $0x20] sm:$0xff]
        %v356 = vld [vmem:[%s4 + $0x28] sm:$0xff]
        %v357 = vld [vmem:[%s4 + $0x30] sm:$0xff]
        %v358 = vld [vmem:[%s4 + $0x38] sm:$0xff]
        %v359 = vld [vmem:[%s291] sm:$0xff]
        %v360 = vld [vmem:[%s291 + $0x8] sm:$0xff]
        %v361 = vld [vmem:[%s291 + $0x10] sm:$0xff]
        %v362 = vld [vmem:[%s291 + $0x18] sm:$0xff]
        %v363 = vld [vmem:[%s291 + $0x20] sm:$0xff]
        %v364 = vld [vmem:[%s291 + $0x28] sm:$0xff]
        %v365 = vld [vmem:[%s291 + $0x30] sm:$0xff]
        %v366 = vld [vmem:[%s291 + $0x38] sm:$0xff]
        %v367 = vld [vmem:[%s291 + $0x40] sm:$0xff]
        %v368 = vld [vmem:[%s291 + $0x48] sm:$0xff]
        %v369 = vld [vmem:[%s291 + $0x50] sm:$0xff]
        %v370 = vld [vmem:[%s291 + $0x58] sm:$0xff]
        %v371 = vld [vmem:[%s291 + $0x60] sm:$0xff]
        %v372 = vld [vmem:[%s291 + $0x68] sm:$0xff]
        %v373 = vld [vmem:[%s291 + $0x70] sm:$0xff]
        %v374 = vld [vmem:[%s291 + $0x78] sm:$0xff]
        %v375 = vld [vmem:[%s300] sm:$0xff]
        %v376 = vld [vmem:[%s300 + $0x8] sm:$0xff]
        %v377 = vld [vmem:[%s300 + $0x10] sm:$0xff]
        %v378 = vld [vmem:[%s300 + $0x18] sm:$0xff]
        %v379 = vld [vmem:[%s300 + $0x20] sm:$0xff]
        %v380 = vld [vmem:[%s300 + $0x28] sm:$0xff]
        %v381 = vld [vmem:[%s300 + $0x30] sm:$0xff]
        %v382 = vld [vmem:[%s300 + $0x38] sm:$0xff]
        %v383 = vld [vmem:[%s309] sm:$0xff]
        %v384 = vld [vmem:[%s309 + $0x8] sm:$0xff]
        %v385 = vld [vmem:[%s309 + $0x10] sm:$0xff]
        %v386 = vld [vmem:[%s309 + $0x18] sm:$0xff]
        %v387 = vld [vmem:[%s309 + $0x20] sm:$0xff]
        %v388 = vld [vmem:[%s309 + $0x28] sm:$0xff]
        %v389 = vld [vmem:[%s309 + $0x30] sm:$0xff]
        %v390 = vld [vmem:[%s309 + $0x38] sm:$0xff]
        %v391 = vld [vmem:[%s309 + $0x40] sm:$0xff]
        %v392 = vld [vmem:[%s309 + $0x48] sm:$0xff]
        %v393 = vld [vmem:[%s309 + $0x50] sm:$0xff]
        %v394 = vld [vmem:[%s309 + $0x58] sm:$0xff]
        %v396 = vcombine.high %v350, %v350
        %vm397 = vcmask 130048
        %v398 = vsel %vm397, %v396, 0
        %400 = vmatprep.subr.mxu0 %v390
        %401 = vmatpush1.msra.mxu0 %v389
        %402 = vmatprep.subr.mxu0 %v388
        %403 = vmatpush1.msra.mxu0 %v387
        %404 = vmatprep.subr.mxu0 %v386
        %405 = vmatpush1.msra.mxu0 %v385
        %406 = vmatprep.subr.mxu0 %v384
        %407 = vmatpush1.msra.mxu0 %v383
        %408 = vmatprep.subr.mxu0 %v382
        %409 = vmatpush1.msra.mxu0 %v381
        %410 = vmatprep.subr.mxu0 %v380
        %411 = vmatpush1.msra.mxu0 %v379
        %412 = vmatprep.subr.mxu0 %v378
        %413 = vmatpush1.msra.mxu0 %v377
        %414 = vmatprep.subr.mxu0 %v376
        %415 = vmatpush1.msra.mxu0 %v375
        %416 = vmatprep.subr.mxu0 %v374
        %417 = vmatpush1.msra.mxu0 %v373
        %418 = vmatprep.subr.mxu0 %v372
        %419 = vmatpush1.msra.mxu0 %v371
        %420 = vmatprep.subr.mxu0 %v370
        %421 = vmatpush1.msra.mxu0 %v369
        %422 = vmatprep.subr.mxu0 %v368
        %423 = vmatpush1.msra.mxu0 %v367
        %424 = vmatprep.subr.mxu0 %v366
        %425 = vmatpush1.msra.mxu0 %v365
        %426 = vmatprep.subr.mxu0 %v364
        %427 = vmatpush1.msra.mxu0 %v363
        %428 = vmatprep.subr.mxu0 %v362
        %429 = vmatpush1.msra.mxu0 %v361
        %430 = vmatprep.subr.mxu0 %v360
        %431 = vmatpush1.msra.mxu0 %v359
        %432 = vmatprep.subr.mxu0 0.0
        %433 = vmatpush2.msra.mxu0 0.0
        %434 = vmatprep.subr.mxu0 0.0
        %435 = vmatpush2.msra.mxu0 0.0
        %436 = vmatprep.subr.mxu0 0.0
        %437 = vmatpush2.msra.mxu0 0.0
        %438 = vmatprep.subr.mxu0 0.0
        %439 = vmatpush2.msra.mxu0 0.0
        %440 = vmatprep.subr.mxu0 0.0
        %441 = vmatpush2.msra.mxu0 0.0
        %442 = vmatprep.subr.mxu0 0.0
        %443 = vmatpush2.msra.mxu0 0.0
        %444 = vmatprep.subr.mxu0 0.0
        %445 = vmatpush2.msra.mxu0 0.0
        %446 = vmatprep.subr.mxu0 0.0
        %447 = vmatpush2.msra.mxu0 0.0
        %448 = vmatprep.subr.mxu0 0.0
        %449 = vmatpush2.msra.mxu0 0.0
        %450 = vmatprep.subr.mxu0 0.0
        %451 = vmatpush2.msra.mxu0 0.0
        %452 = vmatprep.subr.mxu0 0.0
        %453 = vmatpush2.msra.mxu0 0.0
        %454 = vmatprep.subr.mxu0 0.0
        %455 = vmatpush2.msra.mxu0 0.0
        %456 = vmatprep.subr.mxu0 0.0
        %457 = vmatpush2.msra.mxu0 0.0
        %458 = vmatprep.subr.mxu0 0.0
        %459 = vmatpush2.msra.mxu0 0.0
        %460 = vmatprep.subr.mxu0 %v394
        %461 = vmatpush2.msra.mxu0 %v393
        %462 = vmatprep.subr.mxu0 %v392
        %463 = vmatpush2.msra.mxu0 %v391
        %464 = vmatprep.mubr.f32.mxu0 %v398
        %465 = vmatmul.mubr.f32.gmra.mxu0 %v350
        %v466 = vpop.f32.mrf.mxu0
        %v467 = vadd.f32 0.0, %v466
        %v468 = vpop.f32.mrf.mxu0
        %v469 = vadd.f32 0.0, %v468
        %470 = vdwg.mxu0
        %v471 = vmax.f32 %v467, 0.0
        %v472 = vmax.f32 %v469, 0.0
        %vm473 = vcmask 31744
        %v475 = vsel %vm473, %v351, 0
        %v478 = vsel %vm473, %v352, 0
        %v481 = vsel %vm473, %v353, 0
        %v484 = vsel %vm473, %v354, 0
        %v487 = vsel %vm473, %v355, 0
        %v490 = vsel %vm473, %v356, 0
        %v493 = vsel %vm473, %v357, 0
        %v496 = vsel %vm473, %v358, 0
        %vm498 = vcmask 1043456
        %v500 = vsel %vm498, %v471, 0
        %v503 = vsel %vm498, %v472, 0
        %505 = vmatprep.subr.mxu0 0.0
        %506 = vmatpush1.msra.mxu0 0.0
        %507 = vmatprep.subr.mxu0 0.0
        %508 = vmatpush1.msra.mxu0 0.0
        %509 = vmatprep.subr.mxu0 0.0
        %510 = vmatpush1.msra.mxu0 0.0
        %511 = vmatprep.subr.mxu0 0.0
        %512 = vmatpush1.msra.mxu0 0.0
        %513 = vmatprep.subr.mxu0 0.0
        %514 = vmatpush1.msra.mxu0 0.0
        %515 = vmatprep.subr.mxu0 0.0
        %516 = vmatpush1.msra.mxu0 0.0
        %517 = vmatprep.subr.mxu0 0.0
        %518 = vmatpush1.msra.mxu0 0.0
        %519 = vmatprep.subr.mxu0 0.0
        %520 = vmatpush1.msra.mxu0 0.0
        %521 = vmatprep.subr.mxu0 0.0
        %522 = vmatpush1.msra.mxu0 0.0
        %523 = vmatprep.subr.mxu0 0.0
        %524 = vmatpush1.msra.mxu0 0.0
        %525 = vmatprep.subr.mxu0 0.0
        %526 = vmatpush1.msra.mxu0 0.0
        %527 = vmatprep.subr.mxu0 0.0
        %528 = vmatpush1.msra.mxu0 0.0
        %529 = vmatprep.subr.mxu0 0.0
        %530 = vmatpush1.msra.mxu0 0.0
        %531 = vmatprep.subr.mxu0 0.0
        %532 = vmatpush1.msra.mxu0 0.0
        %533 = vmatprep.subr.mxu0 0.0
        %534 = vmatpush1.msra.mxu0 0.0
        %535 = vmatprep.subr.mxu0 %v503
        %536 = vmatpush1.msra.mxu0 %v500
        %537 = vmatprep.subr.mxu0 0.0
        %538 = vmatpush2.msra.mxu0 0.0
        %539 = vmatprep.subr.mxu0 0.0
        %540 = vmatpush2.msra.mxu0 0.0
        %541 = vmatprep.subr.mxu0 0.0
        %542 = vmatpush2.msra.mxu0 0.0
        %543 = vmatprep.subr.mxu0 0.0
        %544 = vmatpush2.msra.mxu0 0.0
        %545 = vmatprep.subr.mxu0 0.0
        %546 = vmatpush2.msra.mxu0 0.0
        %547 = vmatprep.subr.mxu0 0.0
        %548 = vmatpush2.msra.mxu0 0.0
        %549 = vmatprep.subr.mxu0 0.0
        %550 = vmatpush2.msra.mxu0 0.0
        %551 = vmatprep.subr.mxu0 0.0
        %552 = vmatpush2.msra.mxu0 0.0
        %553 = vmatprep.subr.mxu0 0.0
        %554 = vmatpush2.msra.mxu0 0.0
        %555 = vmatprep.subr.mxu0 0.0
        %556 = vmatpush2.msra.mxu0 0.0
        %557 = vmatprep.subr.mxu0 0.0
        %558 = vmatpush2.msra.mxu0 0.0
        %559 = vmatprep.subr.mxu0 0.0
        %560 = vmatpush2.msra.mxu0 0.0
        %561 = vmatprep.subr.mxu0 0.0
        %562 = vmatpush2.msra.mxu0 0.0
        %563 = vmatprep.subr.mxu0 0.0
        %564 = vmatpush2.msra.mxu0 0.0
        %565 = vmatprep.subr.mxu0 0.0
        %566 = vmatpush2.msra.mxu0 0.0
        %567 = vmatprep.subr.mxu0 0.0
        %568 = vmatpush2.msra.mxu0 0.0
        %569 = vmatprep.mubr.f32.mxu0 0.0
        %570 = vmatmul.mubr.f32.gmra.mxu0 %v475
        %v571 = vpop.f32.mrf.mxu0
        %v572 = vadd.f32 0.0, %v571
        %v573 = vpop.f32.mrf.mxu0
        %v574 = vadd.f32 0.0, %v573
        %575 = vmatprep.mubr.f32.mxu0 0.0
        %576 = vmatmul.mubr.f32.gmra.mxu0 %v478
        %v577 = vpop.f32.mrf.mxu0
        %v578 = vadd.f32 0.0, %v577
        %v579 = vpop.f32.mrf.mxu0
        %v580 = vadd.f32 0.0, %v579
        %581 = vmatprep.mubr.f32.mxu0 0.0
        %582 = vmatmul.mubr.f32.gmra.mxu0 %v481
        %v583 = vpop.f32.mrf.mxu0
        %v584 = vadd.f32 0.0, %v583
        %v585 = vpop.f32.mrf.mxu0
        %v586 = vadd.f32 0.0, %v585
        %587 = vmatprep.mubr.f32.mxu0 0.0
        %588 = vmatmul.mubr.f32.gmra.mxu0 %v484
        %v589 = vpop.f32.mrf.mxu0
        %v590 = vadd.f32 0.0, %v589
        %v591 = vpop.f32.mrf.mxu0
        %v592 = vadd.f32 0.0, %v591
        %593 = vmatprep.mubr.f32.mxu0 0.0
        %594 = vmatmul.mubr.f32.gmra.mxu0 %v487
        %v595 = vpop.f32.mrf.mxu0
        %v596 = vadd.f32 0.0, %v595
        %v597 = vpop.f32.mrf.mxu0
        %v598 = vadd.f32 0.0, %v597
        %599 = vmatprep.mubr.f32.mxu0 0.0
        %600 = vmatmul.mubr.f32.gmra.mxu0 %v490
        %v601 = vpop.f32.mrf.mxu0
        %v602 = vadd.f32 0.0, %v601
        %v603 = vpop.f32.mrf.mxu0
        %v604 = vadd.f32 0.0, %v603
        %605 = vmatprep.mubr.f32.mxu0 0.0
        %606 = vmatmul.mubr.f32.gmra.mxu0 %v493
        %v607 = vpop.f32.mrf.mxu0
        %v608 = vadd.f32 0.0, %v607
        %v609 = vpop.f32.mrf.mxu0
        %v610 = vadd.f32 0.0, %v609
        %611 = vmatprep.mubr.f32.mxu0 0.0
        %612 = vmatmul.mubr.f32.gmra.mxu0 %v496
        %v613 = vpop.f32.mrf.mxu0
        %v614 = vadd.f32 0.0, %v613
        %v615 = vpop.f32.mrf.mxu0
        %v616 = vadd.f32 0.0, %v615
        %617 = vdwg.mxu0
        %v618 = vxor.u32 %v572, 2147483648
        %v619 = vxor.u32 %v574, 2147483648
        %v620 = vxor.u32 %v578, 2147483648
        %v621 = vxor.u32 %v580, 2147483648
        %v622 = vxor.u32 %v584, 2147483648
        %v623 = vxor.u32 %v586, 2147483648
        %v624 = vxor.u32 %v590, 2147483648
        %v625 = vxor.u32 %v592, 2147483648
        %v626 = vxor.u32 %v596, 2147483648
        %v627 = vxor.u32 %v598, 2147483648
        %v628 = vxor.u32 %v602, 2147483648
        %v629 = vxor.u32 %v604, 2147483648
        %v630 = vxor.u32 %v608, 2147483648
        %v631 = vxor.u32 %v610, 2147483648
        %v632 = vxor.u32 %v614, 2147483648
        %v633 = vxor.u32 %v616, 2147483648
        %v634 = vmul.f32 %v618, 1.442695
        %v635 = vpow.pop %v634
        %v636 = vmul.f32 %v619, 1.442695
        %v637 = vpow.pop %v636
        %v638 = vmul.f32 %v620, 1.442695
        %v639 = vpow.pop %v638
        %v640 = vmul.f32 %v621, 1.442695
        %v641 = vpow.pop %v640
        %v642 = vmul.f32 %v622, 1.442695
        %v643 = vpow.pop %v642
        %v644 = vmul.f32 %v623, 1.442695
        %v645 = vpow.pop %v644
        %v646 = vmul.f32 %v624, 1.442695
        %v647 = vpow.pop %v646
        %v648 = vmul.f32 %v625, 1.442695
        %v649 = vpow.pop %v648
        %v650 = vmul.f32 %v626, 1.442695
        %v651 = vpow.pop %v650
        %v652 = vmul.f32 %v627, 1.442695
        %v653 = vpow.pop %v652
        %v654 = vmul.f32 %v628, 1.442695
        %v655 = vpow.pop %v654
        %v656 = vmul.f32 %v629, 1.442695
        %v657 = vpow.pop %v656
        %v658 = vmul.f32 %v630, 1.442695
        %v659 = vpow.pop %v658
        %v660 = vmul.f32 %v631, 1.442695
        %v661 = vpow.pop %v660
        %v662 = vmul.f32 %v632, 1.442695
        %v663 = vpow.pop %v662
        %v664 = vmul.f32 %v633, 1.442695
        %v665 = vpow.pop %v664
        %v666 = vadd.f32 %v635, 1.0
        %v667 = vadd.f32 %v637, 1.0
        %v668 = vadd.f32 %v639, 1.0
        %v669 = vadd.f32 %v641, 1.0
        %v670 = vadd.f32 %v643, 1.0
        %v671 = vadd.f32 %v645, 1.0
        %v672 = vadd.f32 %v647, 1.0
        %v673 = vadd.f32 %v649, 1.0
        %v674 = vadd.f32 %v651, 1.0
        %v675 = vadd.f32 %v653, 1.0
        %v676 = vadd.f32 %v655, 1.0
        %v677 = vadd.f32 %v657, 1.0
        %v678 = vadd.f32 %v659, 1.0
        %v679 = vadd.f32 %v661, 1.0
        %v680 = vadd.f32 %v663, 1.0
        %v681 = vadd.f32 %v665, 1.0
        %v682 = vrcp.pop %v666
        %v683 = vmul.f32 1.0, %v682
        %v684 = vrcp.pop %v667
        %v685 = vmul.f32 1.0, %v684
        %v686 = vrcp.pop %v668
        %v687 = vmul.f32 1.0, %v686
        %v688 = vrcp.pop %v669
        %v689 = vmul.f32 1.0, %v688
        %v690 = vrcp.pop %v670
        %v691 = vmul.f32 1.0, %v690
        %v692 = vrcp.pop %v671
        %v693 = vmul.f32 1.0, %v692
        %v694 = vrcp.pop %v672
        %v695 = vmul.f32 1.0, %v694
        %v696 = vrcp.pop %v673
        %v697 = vmul.f32 1.0, %v696
        %v698 = vrcp.pop %v674
        %v699 = vmul.f32 1.0, %v698
        %v700 = vrcp.pop %v675
        %v701 = vmul.f32 1.0, %v700
        %v702 = vrcp.pop %v676
        %v703 = vmul.f32 1.0, %v702
        %v704 = vrcp.pop %v677
        %v705 = vmul.f32 1.0, %v704
        %v706 = vrcp.pop %v678
        %v707 = vmul.f32 1.0, %v706
        %v708 = vrcp.pop %v679
        %v709 = vmul.f32 1.0, %v708
        %v710 = vrcp.pop %v680
        %v711 = vmul.f32 1.0, %v710
        %v712 = vrcp.pop %v681
        %v713 = vmul.f32 1.0, %v712
        %714 = vst [vmem:[%s345] sm:$0xff] %v683
        %715 = vst [vmem:[%s345 + $0x8] sm:$0xff] %v685
        %716 = vst [vmem:[%s345 + $0x10] sm:$0xff] %v687
        %717 = vst [vmem:[%s345 + $0x18] sm:$0xff] %v689
        %718 = vst [vmem:[%s345 + $0x20] sm:$0xff] %v691
        %719 = vst [vmem:[%s345 + $0x28] sm:$0xff] %v693
        %720 = vst [vmem:[%s345 + $0x30] sm:$0xff] %v695
        %721 = vst [vmem:[%s345 + $0x38] sm:$0xff] %v697
        %722 = vst [vmem:[%s345 + $0x40] sm:$0xff] %v699
        %723 = vst [vmem:[%s345 + $0x48] sm:$0xff] %v701
        %724 = vst [vmem:[%s345 + $0x50] sm:$0xff] %v703
        %725 = vst [vmem:[%s345 + $0x58] sm:$0xff] %v705
        %726 = vst [vmem:[%s345 + $0x60] sm:$0xff] %v707
        %727 = vst [vmem:[%s345 + $0x68] sm:$0xff] %v709
        %728 = vst [vmem:[%s345 + $0x70] sm:$0xff] %v711
        %729 = vst [vmem:[%s345 + $0x78] sm:$0xff] %v713
        %s730 = sand.u32 %s173, 1
        %s731 = scalar_lea.sflag [#allocation4], %s730
        %s732 = sand.u32 %s173, 1
        %s733 = smul.addr %s732, 128
        %s734 = scalar_lea.vmem [#allocation8], %s733
        // Predicated region
        $region53: #{tpu_custom_call.1} parent=39 // pred_check
          %p735 = pneg %p183
        $region54: #{tpu_custom_call.1} parent=39 // pred_check_branch
          %737 = sbr.rel (%p735) target = $region56
        $region55: #{tpu_custom_call.1} parent=39 // pred_region
          %s738 = smul.u32 2, %s30
          %s740 = ssub.s32 2048, 2048
          %741 = vsyncadd %s731, %s740
          %s742 = smul.addr %s29, 16
          %s743 = sadd.s32 %s738, %s742
          %s744 = smul.addr %s743, 128
          %s745 = scalar_lea.hbm %s5, %s744
          %s746 = sshll.u32 %s734, 4
          %s747 = int_to_ptr.vmem [resolvable:$true] %s746
          %752 = dma.vmem_to_hbm [thread:$0]  %s747, 2048, %s745, %s731, 256, 256, 16
        $region56: #{tpu_custom_call.1} parent=39 // pred_fallthru
          _
      $region40: #{tpu_custom_call.1} parent=5 // pred_fallthru
        _
      %p753 = scmp.le.s32.totalorder 2, %s20
      // Predicated region
      $region57: #{tpu_custom_call.1} parent=5 // pred_check
        %p754 = pneg %p753
      $region58: #{tpu_custom_call.1} parent=5 // pred_check_branch
        %756 = sbr.rel (%p754) target = $region60
      $region59: #{tpu_custom_call.1} parent=5 // pred_region
        %s757 = ssub.s32 %s20, 2
        // Predicated region
        $region61: #{tpu_custom_call.1} parent=59 // pred_check
          %p758 = pneg %p189
        $region62: #{tpu_custom_call.1} parent=59 // pred_check_branch
          %760 = sbr.rel (%p758) target = $region64
        $region63: #{tpu_custom_call.1} parent=59 // pred_region
          %s761 = sand.u32 %s174, 1
          %s762 = scalar_lea.sflag [#allocation4], %s761
          %s763 = sand.u32 %s174, 1
          %s764 = smul.addr %s763, 128
          %s765 = scalar_lea.vmem [#allocation8], %s764
          %766 = dma.done %s762, 2048
        $region64: #{tpu_custom_call.1} parent=59 // pred_fallthru
          _
      $region60: #{tpu_custom_call.1} parent=5 // pred_fallthru
        _
    $region6: #{tpu_custom_call.1} parent=1 // loop_footer
      %s24 = sadd.s32 1, %s20
    $region7: #{tpu_custom_call.1} parent=1 // loop_footer_branch
      %19 = sbr.rel target = $region3
    $region8: #{tpu_custom_call.1} parent=1 // loop_exit
      _
    %767 = vsyncpa [#allocation3], 1
    %s768 = scalar_lea.sflag [#allocation3], 1
    %769 = vsyncpa %s768, 1
    %770 = vsyncpa [#allocation6], 1
    %s771 = scalar_lea.sflag [#allocation6], 1
    %772 = vsyncpa %s771, 1
    %773 = vsyncpa [#allocation4], 1
    %s774 = scalar_lea.sflag [#allocation4], 1
    %775 = vsyncpa %s774, 1

</llo_original>
